<compile_context>
chip_gen: v7x
topology: tpu7x:2x2x1
jax: 0.10.0
libtpu: 0.0.40
codegen_flags: <defaults>
</compile_context>

<pallas_src>
import functools

import jax
import jax.numpy as jnp
from jax.experimental import pallas as pl
from jax.experimental.pallas import tpu as pltpu


def _round_up(x: int, m: int) -> int:
    return (x + m - 1) // m * m


# ----------------------------------------------------------------------------
# Kernels
# ----------------------------------------------------------------------------
def _linear_embedding_kernel_single_k(x_ref, wt_ref, o_ref):
    # Fast path: whole contraction dimension fits in one tile -> write the
    # output directly, no accumulator scratch, no pl.when branches.
    o_ref[...] = jnp.dot(
        x_ref[...], wt_ref[...], preferred_element_type=jnp.float32
    ).astype(o_ref.dtype)


def _linear_embedding_kernel_acc(x_ref, wt_ref, o_ref, acc_ref):
    # General path: K is tiled (innermost grid axis); f32 VMEM accumulator is
    # resident across it, output written once on the last K step.
    k = pl.program_id(2)

    @pl.when(k == 0)
    def _():
        acc_ref[...] = jnp.zeros_like(acc_ref)

    acc_ref[...] += jnp.dot(
        x_ref[...], wt_ref[...], preferred_element_type=jnp.float32
    )

    @pl.when(k == pl.num_programs(2) - 1)
    def _():
        o_ref[...] = acc_ref[...].astype(o_ref.dtype)


# ----------------------------------------------------------------------------
# Wrapper
# ----------------------------------------------------------------------------
def _linear_embedding_prepared(
    x: jax.Array,
    wt_p: jax.Array,          # pre-transposed, pre-padded, pre-cast (k_p, n_p)
    *,
    d_out: int,
    d_in: int,
    tm: int,
    tn: int,
    tk: int,
    compute_dtype,
    out_dtype=None,
) -> jax.Array:
    n_batch, d_in_x = x.shape
    assert d_in_x == d_in, "d_in mismatch between x and mapping_matrix"
    k_p, n_p = wt_p.shape
    out_dtype = x.dtype if out_dtype is None else out_dtype

    # Batch tile: multiple of 16 (bf16 sublane packing), clamped to problem.
    tm = max(16, min(_round_up(tm, 16), _round_up(n_batch, 16)))
    m_p = _round_up(n_batch, tm)

    # v7x megacore: expose >= 2 parallel tiles when the problem allows it so
    # both TensorCores get work (no-op on single-core v5e/v6e).
    if (m_p // tm) * (n_p // tn) < 2:
        if n_p >= 256:
            half_n = n_p // 2
            tn = half_n if half_n % 128 == 0 else 128
        elif m_p >= 32:
            half_m = m_p // 2
            tm = half_m if half_m % 16 == 0 else 16

    # Pad + cast x once in the wrapper so the kernel streams bf16 tiles.
    # TODO(synk): for best results let the upstream producer emit bf16 so this
    # cast fuses away instead of being a separate HBM round-trip.
    x_p = x.astype(compute_dtype)
    if (m_p, k_p) != (n_batch, d_in):
        x_p = jnp.pad(x_p, ((0, m_p - n_batch), (0, k_p - d_in)))

    grid_m, grid_n, k_steps = m_p // tm, n_p // tn, k_p // tk
    cbytes = jnp.dtype(compute_dtype).itemsize
    obytes = jnp.dtype(out_dtype).itemsize

    cost = pl.CostEstimate(
        flops=2 * m_p * n_p * k_p,
        transcendentals=0,
        bytes_accessed=m_p * k_p * cbytes + k_p * n_p * cbytes + m_p * n_p * obytes,
    )

    # Actual resident footprint (double-buffered inputs/output + accumulator),
    # with headroom; never request the full physical VMEM (v7x has 64 MiB).
    footprint = (
        2 * (tm * tk + tk * tn) * cbytes
        + 2 * tm * tn * obytes
        + (tm * tn * 4 if k_steps > 1 else 0)
    )
    vmem_limit = int(min(48 << 20, max(footprint + (8 << 20), 24 << 20)))

    if k_steps == 1:
        out = pl.pallas_call(
            _linear_embedding_kernel_single_k,
            out_shape=jax.ShapeDtypeStruct((m_p, n_p), out_dtype),
            grid_spec=pltpu.PrefetchScalarGridSpec(
                num_scalar_prefetch=0,
                grid=(grid_m, grid_n),
                in_specs=[
                    pl.BlockSpec((tm, k_p), lambda i, j: (i, 0)),
                    pl.BlockSpec((k_p, tn), lambda i, j: (0, j)),
                ],
                out_specs=pl.BlockSpec((tm, tn), lambda i, j: (i, j)),
            ),
            compiler_params=pltpu.CompilerParams(
                dimension_semantics=("parallel", "parallel"),
                vmem_limit_bytes=vmem_limit,
            ),
            cost_estimate=cost,
        )(x_p, wt_p)
    else:
        out = pl.pallas_call(
            _linear_embedding_kernel_acc,
            out_shape=jax.ShapeDtypeStruct((m_p, n_p), out_dtype),
            grid_spec=pltpu.PrefetchScalarGridSpec(
                num_scalar_prefetch=0,
                grid=(grid_m, grid_n, k_steps),
                in_specs=[
                    pl.BlockSpec((tm, tk), lambda i, j, k: (i, k)),
                    pl.BlockSpec((tk, tn), lambda i, j, k: (k, j)),
                ],
                out_specs=pl.BlockSpec((tm, tn), lambda i, j, k: (i, j)),
                scratch_shapes=[pltpu.VMEM((tm, tn), jnp.float32)],
            ),
            compiler_params=pltpu.CompilerParams(
                dimension_semantics=("parallel", "parallel", "arbitrary"),
                vmem_limit_bytes=vmem_limit,
            ),
            cost_estimate=cost,
        )(x_p, wt_p)

    if (m_p, n_p) != (n_batch, d_out):
        out = out[:n_batch, :d_out]
    return out


def make_linear_embedding(
    mapping_matrix: jax.Array,
    *,
    tm: int = 256,
    tn: int = 256,
    tk: int = 1024,
    compute_dtype=jnp.bfloat16,
):
    """Pallas equivalent of PyTorch `LinearEmbedding(mapping_matrix)`.

    Mirrors `register_buffer`: W is prepared ONCE here (transpose to
    (d_in, d_out), zero-pad to tile multiples, cast to `compute_dtype`) and the
    returned `forward(x)` closure reuses that persistent buffer every call.

    mapping_matrix: (d_out, d_in); forward(x): (n_batch, d_in) -> (n_batch, d_out).
    Pass compute_dtype=jnp.float32 for exact f32 semantics (slower on MXU).
    # TODO(synk): per-generation tile defaults (v6e/v7x can use tm=tn=512,
    # tk=2048); 256/256/1024 is a safe cross-generation default here.
    """
    d_out, d_in = mapping_matrix.shape

    tn = max(128, min(_round_up(tn, 128), _round_up(d_out, 128)))
    tk = max(128, min(_round_up(tk, 128), _round_up(d_in, 128)))
    n_p = _round_up(d_out, tn)
    k_p = _round_up(d_in, tk)

    # One-time W prep, hoisted out of the per-call hot path.
    wt_p = mapping_matrix.astype(compute_dtype).T  # (d_in, d_out)
    if (k_p, n_p) != (d_in, d_out):
        wt_p = jnp.pad(wt_p, ((0, k_p - d_in), (0, n_p - d_out)))
    wt_p = jax.block_until_ready(wt_p)

    return functools.partial(
        _linear_embedding_prepared,
        wt_p=wt_p,
        d_out=d_out,
        d_in=d_in,
        tm=tm,
        tn=tn,
        tk=tk,
        compute_dtype=compute_dtype,
    )


def linear_embedding(x: jax.Array, mapping_matrix: jax.Array, **kwargs) -> jax.Array:
    """One-shot convenience wrapper (W prep not cached across calls)."""
    return make_linear_embedding(mapping_matrix, **kwargs)(x)


if __name__ == "__main__":
    key = jax.random.PRNGKey(0)
    k_x, k_w, k_x2, k_w2 = jax.random.split(key, 4)

    # --- Test 1: small, non-aligned shapes -> single-K fast path + pad/slice.
    n_batch, d_in, d_out = 16, 96, 80
    x = jax.random.normal(k_x, (n_batch, d_in), dtype=jnp.float32)
    w = jax.random.normal(k_w, (d_out, d_in), dtype=jnp.float32)

    fwd = make_linear_embedding(w)          # W prepared once ("register_buffer")
    y = fwd(x)
    jax.block_until_ready(y)
    assert y.shape == (n_batch, d_out)
    assert y.dtype == x.dtype

    # Reference 1: exact same math (bf16 operands, f32 accumulation).
    y_ref_bf16 = jnp.dot(
        x.astype(jnp.bfloat16), w.T.astype(jnp.bfloat16),
        preferred_element_type=jnp.float32,
    ).astype(x.dtype)
    assert jnp.allclose(y, y_ref_bf16, atol=1e-2, rtol=1e-2), "mismatch vs bf16 reference"

    # Reference 2: PyTorch module's f32 forward (loose tol for bf16 MXU inputs).
    y_ref_f32 = x @ w.T
    assert jnp.allclose(y, y_ref_f32, atol=1e-1, rtol=5e-2), "mismatch vs f32 reference"

    # --- Test 2: exercises the K-accumulator path (tk=128 -> 2 K steps) and the
    # megacore tn split (grid becomes (1, 2, 2)).
    n_batch2, d_in2, d_out2 = 32, 256, 256
    x2 = jax.random.normal(k_x2, (n_batch2, d_in2), dtype=jnp.float32)
    w2 = jax.random.normal(k_w2, (d_out2, d_in2), dtype=jnp.float32)

    fwd2 = make_linear_embedding(w2, tn=256, tk=128)
    y2 = fwd2(x2)
    jax.block_until_ready(y2)
    assert y2.shape == (n_batch2, d_out2)
    y2_ref = jnp.dot(
        x2.astype(jnp.bfloat16), w2.T.astype(jnp.bfloat16),
        preferred_element_type=jnp.float32,
    ).astype(x2.dtype)
    assert jnp.allclose(y2, y2_ref, atol=1e-2, rtol=1e-2), "mismatch vs bf16 reference (acc path)"

    print("KERNEL_OK")
</pallas_src>

<mosaic_0001>
module attributes {stable_mosaic.version = 11 : i64} {
  func.func @_linear_embedding_kernel_single_k(%arg0: i32, %arg1: i32, %arg2: memref<16x128xbf16, #tpu.memory_space<vmem>>, %arg3: memref<128x128xbf16, #tpu.memory_space<vmem>>, %arg4: memref<16x128xf32, #tpu.memory_space<vmem>>) attributes {dimension_semantics = [#tpu.dimension_semantics<parallel>, #tpu.dimension_semantics<parallel>], iteration_bounds = array<i64: 1, 1>, scalar_prefetch = 0 : i64, scratch_operands = 0 : i64, tpu.core_type = #tpu.core_type<tc>, window_params = [{transform_indices = @transform_0, window_bounds = array<i64: 16, 128>}, {transform_indices = @transform_1, window_bounds = array<i64: 128, 128>}, {transform_indices = @transform_2, window_bounds = array<i64: 16, 128>}]} {
    %c0 = arith.constant 0 : index
    %c0_0 = arith.constant 0 : index
    %0 = vector.load %arg2[%c0, %c0_0] : memref<16x128xbf16, #tpu.memory_space<vmem>>, vector<16x128xbf16>
    %c0_1 = arith.constant 0 : index
    %c0_2 = arith.constant 0 : index
    %1 = vector.load %arg3[%c0_1, %c0_2] : memref<128x128xbf16, #tpu.memory_space<vmem>>, vector<128x128xbf16>
    %cst = arith.constant dense<0.000000e+00> : vector<16x128xf32>
    %2 = tpu.matmul %0, %1, %cst {dimension_numbers = #tpu.dot_dimension_numbers<[1], [0], [0], [1], [0, 0, 1, 1], [], []>} : vector<16x128xbf16>, vector<128x128xbf16>, vector<16x128xf32> -> vector<16x128xf32>
    %c0_3 = arith.constant 0 : index
    %c0_4 = arith.constant 0 : index
    %3 = vector.load %arg4[%c0_3, %c0_4] : memref<16x128xf32, #tpu.memory_space<vmem>>, vector<16x128xf32>
    tpu.vector_store %arg4[%c0_3, %c0_4], %2 {strides = array<i32>} : memref<16x128xf32, #tpu.memory_space<vmem>>, vector<16x128xf32>,
    return
  }
  func.func @transform_0(%arg0: i32, %arg1: i32) -> (i32, i32) {
    %c0_i32 = arith.constant 0 : i32
    %c0_i32_0 = arith.constant 0 : i32
    return %arg0, %c0_i32 : i32, i32
  }
  func.func @transform_1(%arg0: i32, %arg1: i32) -> (i32, i32) {
    %c0_i32 = arith.constant 0 : i32
    %c0_i32_0 = arith.constant 0 : i32
    return %c0_i32, %arg1 : i32, i32
  }
  func.func @transform_2(%arg0: i32, %arg1: i32) -> (i32, i32) {
    %c0_i32 = arith.constant 0 : i32
    return %arg0, %arg1 : i32, i32
  }
}

</mosaic_0001>

<llo_original>
// kernel: tpu_custom_call.1
$region0: #{tpu_custom_call.1}
  #allocation0 [shape = 'u32[]', space=smem, size = 0x4, offset = 0x4, fixed_abs, tag = 'smem constant byte address 0x4 - core index']
  #allocation1 [shape = 'u32[144,128]{1,0:T(1,128)}', space=vmem, size = 0x12000, scoped, tag = 'internal scratch']
  %s0 = inlined_call_operand.hbm [shape: bf16[16,128], index: 0, kind: input, shape index: {}]
  %s1 = inlined_call_operand.hbm [shape: bf16[128,128], index: 1, kind: input, shape index: {}]
  %s2 = inlined_call_operand.hbm [shape: f32[16,128], index: 2, kind: output, shape index: {}]
  %s3 = sld [smem:[#allocation0]]
  $region26: #{tpu_custom_call.1} parent=0
    _
  %s5 = ssub.s32 1, %s3
  %s6 = scalar_select 0, %s5, %s3
  $region1: #{tpu_custom_call.1} parent=0
    #allocation2 [shape = 'u8[4096]{0}', space=vmem, size = 0x1000, scoped, tag = 'input window, operand 0, single buffered']
    #allocation3 [shape = 's32[1]{0}', space=sflag, size = 0x4, scoped, tag = 'scoped memory for tpu_custom_call.1']
    #allocation4 [shape = 's32[1]{0}', space=sflag, size = 0x4, scoped, tag = 'scoped memory for tpu_custom_call.1']
    #allocation5 [shape = 'u8[32768]{0}', space=vmem, size = 0x8000, scoped, tag = 'input window, operand 1, single buffered']
    #allocation6 [shape = 's32[1]{0}', space=sflag, size = 0x4, scoped, tag = 'scoped memory for tpu_custom_call.1']
    #allocation7 [shape = 'u8[8192]{0}', space=vmem, size = 0x2000, scoped, tag = 'output window, operand 0, single buffered']
    %7 = vsyncpa [#allocation3], 0
    %8 = vsyncpa [#allocation6], 0
    %9 = vsyncpa [#allocation4], 0
    // Predicated region
    $region2: #{tpu_custom_call.1} parent=1 // pred_check
      _
    $region3: #{tpu_custom_call.1} parent=1 // pred_check_branch
      %11 = sbr.rel (0) target = $region5
    $region4: #{tpu_custom_call.1} parent=1 // pred_region
      %s13 = ssub.s32 128, 128
      %14 = vsyncadd [#allocation3], %s13
      %s15 = sshll.u32 [#allocation2], 4
      %s16 = int_to_ptr.vmem [resolvable:$true] %s15
      %21 = dma.hbm_to_vmem [thread:$0]  %s0, 128, %s16, [#allocation3], 64, 64, 4
    $region5: #{tpu_custom_call.1} parent=1 // pred_fallthru
      _
    // Predicated region
    $region6: #{tpu_custom_call.1} parent=1 // pred_check
      _
    $region7: #{tpu_custom_call.1} parent=1 // pred_check_branch
      %23 = sbr.rel (0) target = $region9
    $region8: #{tpu_custom_call.1} parent=1 // pred_region
      %s25 = ssub.s32 1024, 1024
      %26 = vsyncadd [#allocation6], %s25
      %s27 = sshll.u32 [#allocation5], 4
      %s28 = int_to_ptr.vmem [resolvable:$true] %s27
      %33 = dma.hbm_to_vmem [thread:$0]  %s1, 1024, %s28, [#allocation6], 64, 64, 4
    $region9: #{tpu_custom_call.1} parent=1 // pred_fallthru
      _
    // Predicated region
    $region10: #{tpu_custom_call.1} parent=1 // pred_check
      _
    $region11: #{tpu_custom_call.1} parent=1 // pred_check_branch
      %35 = sbr.rel (0) target = $region13
    $region12: #{tpu_custom_call.1} parent=1 // pred_region
      %36 = dma.done [#allocation3], 128
    $region13: #{tpu_custom_call.1} parent=1 // pred_fallthru
      _
    // Predicated region
    $region14: #{tpu_custom_call.1} parent=1 // pred_check
      _
    $region15: #{tpu_custom_call.1} parent=1 // pred_check_branch
      %38 = sbr.rel (0) target = $region17
    $region16: #{tpu_custom_call.1} parent=1 // pred_region
      %39 = dma.done [#allocation6], 1024
    $region17: #{tpu_custom_call.1} parent=1 // pred_fallthru
      _
    %v41 = vld [vmem:[#allocation2] sm:$0xf]
    %v42 = vld [vmem:[#allocation2 + $0x4] sm:$0xf]
    %v43 = vld [vmem:[#allocation5] sm:$0xf]
    %v44 = vld [vmem:[#allocation5 + $0x4] sm:$0xf]
    %v45 = vld [vmem:[#allocation5 + $0x8] sm:$0xf]
    %v46 = vld [vmem:[#allocation5 + $0xc] sm:$0xf]
    %v47 = vld [vmem:[#allocation5 + $0x10] sm:$0xf]
    %v48 = vld [vmem:[#allocation5 + $0x14] sm:$0xf]
    %v49 = vld [vmem:[#allocation5 + $0x18] sm:$0xf]
    %v50 = vld [vmem:[#allocation5 + $0x1c] sm:$0xf]
    %v51 = vld [vmem:[#allocation5 + $0x20] sm:$0xf]
    %v52 = vld [vmem:[#allocation5 + $0x24] sm:$0xf]
    %v53 = vld [vmem:[#allocation5 + $0x28] sm:$0xf]
    %v54 = vld [vmem:[#allocation5 + $0x2c] sm:$0xf]
    %v55 = vld [vmem:[#allocation5 + $0x30] sm:$0xf]
    %v56 = vld [vmem:[#allocation5 + $0x34] sm:$0xf]
    %v57 = vld [vmem:[#allocation5 + $0x38] sm:$0xf]
    %v58 = vld [vmem:[#allocation5 + $0x3c] sm:$0xf]
    %v61 = vunpack.c.l.b16 %v41
    %v62 = vunpack.c.l.b16 %v42
    %v63 = vpack.c.b16 %v62, %v61
    %v81 = vunpack.c.l.b16 %v43
    %v82 = vunpack.c.l.b16 %v44
    %v83 = vunpack.c.l.b16 %v45
    %v84 = vunpack.c.l.b16 %v46
    %v85 = vunpack.c.l.b16 %v47
    %v86 = vunpack.c.l.b16 %v48
    %v87 = vunpack.c.l.b16 %v49
    %v88 = vunpack.c.l.b16 %v50
    %v89 = vunpack.c.l.b16 %v51
    %v90 = vunpack.c.l.b16 %v52
    %v91 = vunpack.c.l.b16 %v53
    %v92 = vunpack.c.l.b16 %v54
    %v93 = vunpack.c.l.b16 %v55
    %v94 = vunpack.c.l.b16 %v56
    %v95 = vunpack.c.l.b16 %v57
    %v96 = vunpack.c.l.b16 %v58
    %v97 = vpack.c.b16 %v82, %v81
    %v98 = vpack.c.b16 %v84, %v83
    %v99 = vpack.c.b16 %v86, %v85
    %v100 = vpack.c.b16 %v88, %v87
    %v101 = vpack.c.b16 %v90, %v89
    %v102 = vpack.c.b16 %v92, %v91
    %v103 = vpack.c.b16 %v94, %v93
    %v104 = vpack.c.b16 %v96, %v95
    %113 = vmatprep.subr.bf16.mxu0 0
    %114 = vmatpush1.bf16.msra.mxu0 %v97
    %115 = vmatprep.subr.bf16.mxu0 0
    %116 = vmatpush1.bf16.msra.mxu0 %v98
    %117 = vmatprep.subr.bf16.mxu0 0
    %118 = vmatpush1.bf16.msra.mxu0 %v99
    %119 = vmatprep.subr.bf16.mxu0 0
    %120 = vmatpush1.bf16.msra.mxu0 %v100
    %121 = vmatprep.subr.bf16.mxu0 0
    %122 = vmatpush1.bf16.msra.mxu0 %v101
    %123 = vmatprep.subr.bf16.mxu0 0
    %124 = vmatpush1.bf16.msra.mxu0 %v102
    %125 = vmatprep.subr.bf16.mxu0 0
    %126 = vmatpush1.bf16.msra.mxu0 %v103
    %127 = vmatprep.subr.bf16.mxu0 0
    %128 = vmatpush1.bf16.msra.mxu0 %v104
    %129 = vmatprep.subr.bf16.mxu0 0
    %130 = vmatpush1.bf16.msra.mxu0 0
    %131 = vmatprep.subr.bf16.mxu0 0
    %132 = vmatpush1.bf16.msra.mxu0 0
    %133 = vmatprep.subr.bf16.mxu0 0
    %134 = vmatpush1.bf16.msra.mxu0 0
    %135 = vmatprep.subr.bf16.mxu0 0
    %136 = vmatpush1.bf16.msra.mxu0 0
    %137 = vmatprep.subr.bf16.mxu0 0
    %138 = vmatpush1.bf16.msra.mxu0 0
    %139 = vmatprep.subr.bf16.mxu0 0
    %140 = vmatpush1.bf16.msra.mxu0 0
    %141 = vmatprep.subr.bf16.mxu0 0
    %142 = vmatpush1.bf16.msra.mxu0 0
    %143 = vmatprep.subr.bf16.mxu0 0
    %144 = vmatpush1.bf16.msra.mxu0 0
    %145 = vmatprep.mubr.bf16.mxu0 0
    %146 = vmatmul.mubr.bf16.gmra.mrb[0].mxu0 %v63
    %v147 = vpop.f32.mrb[0].mxu0
    %v148 = vadd.f32 0.0, %v147
    %v149 = vpop.f32.mrb[0].mxu0
    %v150 = vpop.f32.mrb[0].mxu0
    %v151 = vadd.f32 0.0, %v150
    %v152 = vpop.f32.mrb[0].mxu0
    %153 = vdwg.mxu0
    %154 = vst [vmem:[#allocation7] sm:$0xff] %v148
    %155 = vst [vmem:[#allocation7 + $0x8] sm:$0xff] %v151
    // Predicated region
    $region18: #{tpu_custom_call.1} parent=1 // pred_check
      _
    $region19: #{tpu_custom_call.1} parent=1 // pred_check_branch
      %157 = sbr.rel (0) target = $region21
    $region20: #{tpu_custom_call.1} parent=1 // pred_region
      %s159 = ssub.s32 256, 256
      %160 = vsyncadd [#allocation4], %s159
      %s161 = sshll.u32 [#allocation7], 4
      %s162 = int_to_ptr.vmem [resolvable:$true] %s161
      %167 = dma.vmem_to_hbm [thread:$0]  %s162, 256, %s2, [#allocation4], 128, 128, 8
    $region21: #{tpu_custom_call.1} parent=1 // pred_fallthru
      _
    // Predicated region
    $region22: #{tpu_custom_call.1} parent=1 // pred_check
      _
    $region23: #{tpu_custom_call.1} parent=1 // pred_check_branch
      %169 = sbr.rel (0) target = $region25
    $region24: #{tpu_custom_call.1} parent=1 // pred_region
      %170 = dma.done [#allocation4], 256
    $region25: #{tpu_custom_call.1} parent=1 // pred_fallthru
      _
    %171 = vsyncpa [#allocation3], 1
    %172 = vsyncpa [#allocation6], 1
    %173 = vsyncpa [#allocation4], 1

</llo_original>
